<compile_context>
chip_gen: v6e
topology: v6e:2x2x1
jax: 0.10.0
libtpu: 0.0.40
codegen_flags: <defaults>
</compile_context>

<pallas_src>
import functools

import jax
import jax.numpy as jnp
from jax import lax
from jax.experimental import pallas as pl
from jax.experimental.pallas import tpu as pltpu


def _pick_tile(total, preferred, quantum):
    """Largest multiple of `quantum` <= `preferred` that divides `total`.

    Falls back to `total` (full extent) if no such divisor exists, which keeps
    every grid extent exact (no ragged / clamped blocks on reduction axes).
    """
    if total <= preferred:
        return total
    t = (preferred // quantum) * quantum
    while t >= quantum:
        if total % t == 0:
            return t
        t -= quantum
    return total


def _vmem_capacity_bytes():
    try:
        return pltpu.get_tpu_info().vmem_capacity_bytes
    except Exception:
        return 64 << 20  # conservative (v7x per-TC size)


# --------------------------------------------------------------------------
# T row:  T = 2 * q_abs / (q_abs @ |W W^T|)   -- batch-invariant, tiled.
# --------------------------------------------------------------------------
def _t_kernel(w_r_ref, w_c_ref, q_r_ref, q_c_ref, t_ref, denom_ref, *, epsilon):
    r = pl.program_id(1)  # reduction over row blocks of W W^T

    @pl.when(r == 0)
    def _():
        denom_ref[...] = jnp.zeros_like(denom_ref)

    w_r = w_r_ref[...].astype(jnp.float32)                       # (tr, cin)
    w_c = w_c_ref[...].astype(jnp.float32)                       # (tc, cin)
    # (tr, tc) slab of W W^T: contract over cin on both sides (no transpose).
    wwt = lax.dot_general(w_r, w_c, (((1,), (1,)), ((), ())),
                          preferred_element_type=jnp.float32)
    q_abs_r = jnp.abs(q_r_ref[...].astype(jnp.float32)) + epsilon  # (1, tr)
    denom_ref[...] += lax.dot_general(q_abs_r, jnp.abs(wwt),
                                      (((1,), (0,)), ((), ())),
                                      preferred_element_type=jnp.float32)

    @pl.when(r == pl.num_programs(1) - 1)
    def _():
        q_abs_c = jnp.abs(q_c_ref[...].astype(jnp.float32)) + epsilon
        # NOTE: matches PyTorch reference exactly -- no extra guard on denom
        # (an all-zero W row would give inf in the reference too).
        t_ref[...] = 2.0 * q_abs_c / denom_ref[...]


def _compute_t(weights, q, epsilon, block_cout=256):
    cout, cin = weights.shape
    tc = _pick_tile(cout, block_cout, 128)   # (1, tc) blocks need tc%128==0 or full
    tr = tc
    grid = (cout // tc, cout // tr)
    q2 = q.reshape(1, cout)

    wbytes = jnp.dtype(weights.dtype).itemsize
    need = (4 * tr * cin * wbytes            # two W slabs, double-buffered
            + 4 * (tr + tc) * 4              # q rows
            + tr * tc * 4                    # |WWT| slab
            + 2 * tc * 4)                    # denom scratch + T out
    vmem_cap = _vmem_capacity_bytes()
    vmem_limit = int(min(max(2 * need, 32 << 20), min((vmem_cap * 7) // 8, 100 << 20)))

    return pl.pallas_call(
        functools.partial(_t_kernel, epsilon=epsilon),
        out_shape=jax.ShapeDtypeStruct((1, cout), jnp.float32),
        grid=grid,
        in_specs=[
            pl.BlockSpec((tr, cin), lambda c, r: (r, 0)),   # W row block (reduction)
            pl.BlockSpec((tc, cin), lambda c, r: (c, 0)),   # W col block (output cols)
            pl.BlockSpec((1, tr), lambda c, r: (0, r)),     # q over row block
            pl.BlockSpec((1, tc), lambda c, r: (0, c)),     # q over col block
        ],
        out_specs=pl.BlockSpec((1, tc), lambda c, r: (0, c)),
        scratch_shapes=[pltpu.VMEM((1, tc), jnp.float32)],
        compiler_params=pltpu.CompilerParams(
            dimension_semantics=("parallel", "arbitrary"),
            vmem_limit_bytes=vmem_limit),
    )(weights, weights, q2, q2)


# --------------------------------------------------------------------------
# Main kernel: out = x - (T * relu(x @ W^T + b)) @ W, W streamed over cout.
# --------------------------------------------------------------------------
def _sdp_forward_kernel(x_ref, w_ref, b_ref, t_ref, out_ref, acc_ref):
    k = pl.program_id(1)  # cout-block reduction axis

    @pl.when(k == 0)
    def _():
        acc_ref[...] = jnp.zeros_like(acc_ref)

    x = x_ref[...]                                               # (tb, cin)
    w = w_ref[...]                                               # (tk, cin)

    # res_k = relu(x @ W_k^T + b_k) * T_k  (f32 MXU accumulation, f32 epilogue)
    res = lax.dot_general(x, w, (((1,), (1,)), ((), ())),
                          preferred_element_type=jnp.float32)    # (tb, tk)
    res = jnp.maximum(res + b_ref[...], 0.0) * t_ref[...]

    # acc += res_k @ W_k : this cout block's contribution to (T*res) @ W.
    acc_ref[...] += lax.dot_general(res.astype(w.dtype), w,
                                    (((1,), (0,)), ((), ())),
                                    preferred_element_type=jnp.float32)

    @pl.when(k == pl.num_programs(1) - 1)
    def _():
        out_ref[...] = (x.astype(jnp.float32) - acc_ref[...]).astype(out_ref.dtype)


def sdp_lipschitz_linear(x, weights, bias, q, epsilon=1e-6,
                         block_b=256, block_cout=256):
    """x: (B, cin); weights: (cout, cin); bias, q: (cout,).  Returns (B, cin)."""
    B, cin = x.shape
    cout, cin_w = weights.shape
    assert cin_w == cin, (cin_w, cin)

    vmem_cap = _vmem_capacity_bytes()
    # v7x has half the per-TC VMEM of v5e/v6e: shrink the batch tile.
    if vmem_cap <= (64 << 20) and block_b > 128:
        block_b = block_b // 2

    # ---- batch-invariant T row, computed once per call (tiled over cout).
    t = _compute_t(weights, q, epsilon, block_cout=block_cout)

    # ---- tile sizes.
    tb = _pick_tile(B, block_b, 8)           # MXU-friendly rows, sublane-aligned
    # Megacore: keep >=2 batch steps so the "parallel" axis splits across the
    # two v7x TensorCores (harmless on single-TC v5e/v6e).
    if B // tb < 2 and B >= 256:
        tb = _pick_tile(B, max(128, B // 2), 8)
    grid_b = B // tb

    tk = _pick_tile(cout, block_cout, 128)   # (1, tk) bias/T blocks: tk%128==0 or full
    grid_k = cout // tk

    b2 = bias.reshape(1, cout).astype(jnp.float32)

    xbytes = jnp.dtype(x.dtype).itemsize
    wbytes = jnp.dtype(weights.dtype).itemsize
    need = (4 * tb * cin * xbytes            # x + out tiles, double-buffered
            + 2 * tk * cin * wbytes          # W tile, double-buffered
            + 8 * tk * 4                     # bias + T tiles (f32), double-buffered
            + tb * cin * 4                   # f32 accumulator scratch
            + 2 * tb * tk * 4)               # f32 res intermediate headroom
    vmem_limit = int(min(max(2 * need, 32 << 20), min((vmem_cap * 7) // 8, 100 << 20)))

    cost = pl.CostEstimate(
        flops=4 * B * cin * cout,            # two MXU matmuls per batch element
        transcendentals=0,
        bytes_accessed=(2 * B * cin * xbytes                   # x + out
                        + grid_b * cout * cin * wbytes         # W re-read per batch tile
                        + grid_b * 2 * cout * 4),              # bias + T
    )

    out = pl.pallas_call(
        _sdp_forward_kernel,
        out_shape=jax.ShapeDtypeStruct((B, cin), x.dtype),
        grid=(grid_b, grid_k),
        in_specs=[
            pl.BlockSpec((tb, cin), lambda i, k: (i, 0)),   # x: tiled over batch
            pl.BlockSpec((tk, cin), lambda i, k: (k, 0)),   # W: streamed over cout
            pl.BlockSpec((1, tk), lambda i, k: (0, k)),     # bias block
            pl.BlockSpec((1, tk), lambda i, k: (0, k)),     # T block
        ],
        out_specs=pl.BlockSpec((tb, cin), lambda i, k: (i, 0)),
        scratch_shapes=[pltpu.VMEM((tb, cin), jnp.float32)],
        compiler_params=pltpu.CompilerParams(
            dimension_semantics=("parallel", "arbitrary"),
            vmem_limit_bytes=vmem_limit),
        cost_estimate=cost,
    )(x, weights, b2, t)
    return out


# --------------------------------------------------------------------------
# Pure-JAX reference + self-test.
# --------------------------------------------------------------------------
def _reference(x, weights, bias, q, epsilon=1e-6):
    xf = x.astype(jnp.float32)
    wf = weights.astype(jnp.float32)
    res = xf @ wf.T + bias
    res = jnp.maximum(res, 0.0)
    q_abs = jnp.abs(q) + epsilon
    wwt = wf @ wf.T
    t = 2.0 / jnp.abs((1.0 / q_abs)[:, None] * wwt * q_abs[None, :]).sum(axis=1)
    res = t[None, :] * res
    res = res @ wf
    return xf - res


def _make_inputs(key, B, cin, cout):
    kx, kw, kb, kq = jax.random.split(key, 4)
    # Mirrors the PyTorch init: xavier_normal_ W, U(-1/sqrt(fan_in),·) bias, U(0,1) q.
    std = (2.0 / (cin + cout)) ** 0.5
    weights = std * jax.random.normal(kw, (cout, cin), dtype=jnp.float32)
    bound = 1.0 / (cin ** 0.5)
    bias = jax.random.uniform(kb, (cout,), minval=-bound, maxval=bound,
                              dtype=jnp.float32)
    q = jax.random.uniform(kq, (cout,), dtype=jnp.float32)
    x = jax.random.normal(kx, (B, cin), dtype=jnp.float32)
    return x, weights, bias, q


if __name__ == "__main__":
    key = jax.random.PRNGKey(0)
    k1, k2 = jax.random.split(key)

    # ---- small config: 2 batch tiles, single cout block, single T block.
    B, cin, cout = 16, 32, 16
    x, w, b, q = _make_inputs(k1, B, cin, cout)
    out = jax.block_until_ready(sdp_lipschitz_linear(x, w, b, q, block_b=8))
    ref = _reference(x, w, b, q)
    assert out.shape == (B, cin)
    err = float(jnp.max(jnp.abs(out - ref)))
    assert jnp.allclose(out, ref, atol=5e-5, rtol=5e-5), f"small f32 err={err}"

    # ---- medium config: exercises W streaming (grid_k=3), batch pipeline
    #      (grid_b=2) and the tiled T kernel (3x3 grid).
    B, cin, cout = 256, 128, 384
    x, w, b, q = _make_inputs(k2, B, cin, cout)
    out = jax.block_until_ready(
        sdp_lipschitz_linear(x, w, b, q, block_b=128, block_cout=128))
    ref = _reference(x, w, b, q)
    err = float(jnp.max(jnp.abs(out - ref)))
    assert jnp.allclose(out, ref, atol=5e-4, rtol=5e-4), f"medium f32 err={err}"

    # ---- bf16 inputs: full-rate MXU, f32 accumulation / epilogue.
    out_bf16 = jax.block_until_ready(
        sdp_lipschitz_linear(x.astype(jnp.bfloat16), w.astype(jnp.bfloat16),
                             b, q, block_b=128, block_cout=128))
    assert out_bf16.dtype == jnp.bfloat16
    err = float(jnp.max(jnp.abs(out_bf16.astype(jnp.float32) - ref)))
    assert jnp.allclose(out_bf16.astype(jnp.float32), ref, atol=1e-1, rtol=1e-1), \
        f"bf16 err={err}"

    print("KERNEL_OK")
</pallas_src>

<mosaic_0001>
module attributes {stable_mosaic.version = 11 : i64} {
  func.func @_t_kernel(%arg0: i32, %arg1: i32, %arg2: memref<16x32xf32, #tpu.memory_space<vmem>>, %arg3: memref<16x32xf32, #tpu.memory_space<vmem>>, %arg4: memref<1x16xf32, #tpu.memory_space<vmem>>, %arg5: memref<1x16xf32, #tpu.memory_space<vmem>>, %arg6: memref<1x16xf32, #tpu.memory_space<vmem>>, %arg7: memref<1x16xf32, #tpu.memory_space<vmem>>) attributes {dimension_semantics = [#tpu.dimension_semantics<parallel>, #tpu.dimension_semantics<arbitrary>], iteration_bounds = array<i64: 1, 1>, scalar_prefetch = 0 : i64, scratch_operands = 1 : i64, tpu.core_type = #tpu.core_type<tc>, window_params = [{transform_indices = @transform_0, window_bounds = array<i64: 16, 32>}, {transform_indices = @transform_1, window_bounds = array<i64: 16, 32>}, {transform_indices = @transform_2, window_bounds = array<i64: 1, 16>}, {transform_indices = @transform_3, window_bounds = array<i64: 1, 16>}, {transform_indices = @transform_4, window_bounds = array<i64: 1, 16>}]} {
    %c0_i32 = arith.constant 0 : i32
    %0 = arith.cmpi eq, %arg1, %c0_i32 : i32
    %1 = arith.extui %0 : i1 to i32
    %c0_i32_0 = arith.constant 0 : i32
    %2 = arith.cmpi ne, %1, %c0_i32_0 : i32
    scf.if %2 {
      %cst_14 = arith.constant 0.000000e+00 : f32
      %18 = vector.broadcast %cst_14 : f32 to vector<1x16xf32>
      %c0_15 = arith.constant 0 : index
      %c0_16 = arith.constant 0 : index
      %19 = vector.load %arg7[%c0_15, %c0_16] : memref<1x16xf32, #tpu.memory_space<vmem>>, vector<1x16xf32>
      tpu.vector_store %arg7[%c0_15, %c0_16], %18 {strides = array<i32>} : memref<1x16xf32, #tpu.memory_space<vmem>>, vector<1x16xf32>,
    } else {
    }
    %c0 = arith.constant 0 : index
    %c0_1 = arith.constant 0 : index
    %3 = vector.load %arg2[%c0, %c0_1] : memref<16x32xf32, #tpu.memory_space<vmem>>, vector<16x32xf32>
    %c0_2 = arith.constant 0 : index
    %c0_3 = arith.constant 0 : index
    %4 = vector.load %arg3[%c0_2, %c0_3] : memref<16x32xf32, #tpu.memory_space<vmem>>, vector<16x32xf32>
    %cst = arith.constant dense<0.000000e+00> : vector<16x16xf32>
    %5 = tpu.matmul %3, %4, %cst {dimension_numbers = #tpu.dot_dimension_numbers<[1], [1], [0], [0], [0, 0, 1, 0], [], []>} : vector<16x32xf32>, vector<16x32xf32>, vector<16x16xf32> -> vector<16x16xf32>
    %c0_4 = arith.constant 0 : index
    %c0_5 = arith.constant 0 : index
    %6 = vector.load %arg4[%c0_4, %c0_5] : memref<1x16xf32, #tpu.memory_space<vmem>>, vector<1x16xf32>
    %7 = math.absf %6 : vector<1x16xf32>
    %cst_6 = arith.constant 9.99999997E-7 : f32
    %8 = vector.broadcast %cst_6 : f32 to vector<1x16xf32>
    %9 = arith.addf %7, %8 : vector<1x16xf32>
    %c0_7 = arith.constant 0 : index
    %c0_8 = arith.constant 0 : index
    %10 = vector.load %arg7[%c0_7, %c0_8] : memref<1x16xf32, #tpu.memory_space<vmem>>, vector<1x16xf32>
    %11 = math.absf %5 : vector<16x16xf32>
    %cst_9 = arith.constant dense<0.000000e+00> : vector<1x16xf32>
    %12 = tpu.matmul %9, %11, %cst_9 {dimension_numbers = #tpu.dot_dimension_numbers<[1], [0], [0], [1], [0, 0, 1, 1], [], []>} : vector<1x16xf32>, vector<16x16xf32>, vector<1x16xf32> -> vector<1x16xf32>
    %13 = arith.addf %10, %12 : vector<1x16xf32>
    %c0_10 = arith.constant 0 : index
    %c0_11 = arith.constant 0 : index
    %14 = vector.load %arg7[%c0_10, %c0_11] : memref<1x16xf32, #tpu.memory_space<vmem>>, vector<1x16xf32>
    tpu.vector_store %arg7[%c0_10, %c0_11], %13 {strides = array<i32>} : memref<1x16xf32, #tpu.memory_space<vmem>>, vector<1x16xf32>,
    %c0_i32_12 = arith.constant 0 : i32
    %15 = arith.cmpi eq, %arg1, %c0_i32_12 : i32
    %16 = arith.extui %15 : i1 to i32
    %c0_i32_13 = arith.constant 0 : i32
    %17 = arith.cmpi ne, %16, %c0_i32_13 : i32
    scf.if %17 {
      %c0_14 = arith.constant 0 : index
      %c0_15 = arith.constant 0 : index
      %18 = vector.load %arg5[%c0_14, %c0_15] : memref<1x16xf32, #tpu.memory_space<vmem>>, vector<1x16xf32>
      %19 = math.absf %18 : vector<1x16xf32>
      %cst_16 = arith.constant 9.99999997E-7 : f32
      %20 = vector.broadcast %cst_16 : f32 to vector<1x16xf32>
      %21 = arith.addf %19, %20 : vector<1x16xf32>
      %cst_17 = arith.constant 2.000000e+00 : f32
      %22 = vector.broadcast %cst_17 : f32 to vector<1x16xf32>
      %23 = arith.mulf %22, %21 : vector<1x16xf32>
      %c0_18 = arith.constant 0 : index
      %c0_19 = arith.constant 0 : index
      %24 = vector.load %arg7[%c0_18, %c0_19] : memref<1x16xf32, #tpu.memory_space<vmem>>, vector<1x16xf32>
      %25 = arith.divf %23, %24 : vector<1x16xf32>
      %c0_20 = arith.constant 0 : index
      %c0_21 = arith.constant 0 : index
      %26 = vector.load %arg6[%c0_20, %c0_21] : memref<1x16xf32, #tpu.memory_space<vmem>>, vector<1x16xf32>
      tpu.vector_store %arg6[%c0_20, %c0_21], %25 {strides = array<i32>} : memref<1x16xf32, #tpu.memory_space<vmem>>, vector<1x16xf32>,
    } else {
    }
    return
  }
  func.func @transform_0(%arg0: i32, %arg1: i32) -> (i32, i32) {
    %c0_i32 = arith.constant 0 : i32
    %c0_i32_0 = arith.constant 0 : i32
    return %arg1, %c0_i32 : i32, i32
  }
  func.func @transform_1(%arg0: i32, %arg1: i32) -> (i32, i32) {
    %c0_i32 = arith.constant 0 : i32
    %c0_i32_0 = arith.constant 0 : i32
    return %arg0, %c0_i32 : i32, i32
  }
  func.func @transform_2(%arg0: i32, %arg1: i32) -> (i32, i32) {
    %c0_i32 = arith.constant 0 : i32
    %c0_i32_0 = arith.constant 0 : i32
    return %c0_i32, %arg1 : i32, i32
  }
  func.func @transform_3(%arg0: i32, %arg1: i32) -> (i32, i32) {
    %c0_i32 = arith.constant 0 : i32
    %c0_i32_0 = arith.constant 0 : i32
    return %c0_i32, %arg0 : i32, i32
  }
  func.func @transform_4(%arg0: i32, %arg1: i32) -> (i32, i32) {
    %c0_i32 = arith.constant 0 : i32
    %c0_i32_0 = arith.constant 0 : i32
    return %c0_i32, %arg0 : i32, i32
  }
}

</mosaic_0001>

<llo_original>
// kernel: tpu_custom_call.1
$region0: #{tpu_custom_call.1}
  #allocation0 [shape = 'u32[]', space=smem, size = 0x4, offset = 0x4, fixed_abs, tag = 'smem constant byte address 0x4 - core index']
  #allocation1 [shape = 'u32[144,128]{1,0:T(1,128)}', space=vmem, size = 0x12000, scoped, tag = 'internal scratch']
  #allocation2 [shape = 'f32[1,16]{1,0:T(1,128)}', space=vmem, size = 0x200, scoped, tag = 'scratch operand']
  %s0 = inlined_call_operand.hbm [shape: f32[16,32], index: 0, kind: input, shape index: {}]
  %s1 = inlined_call_operand.hbm [shape: f32[16,32], index: 1, kind: input, shape index: {}]
  %s2 = inlined_call_operand.vmem [shape: f32[1,16], index: 2, kind: input, shape index: {}]
  %s3 = inlined_call_operand.vmem [shape: f32[1,16], index: 3, kind: input, shape index: {}]
  %s4 = inlined_call_operand.hbm [shape: f32[1,16], index: 4, kind: output, shape index: {}]
  %s5 = sld [smem:[#allocation0]]
  $region42: #{tpu_custom_call.1} parent=0
    _
  %s7 = ssub.s32 1, %s5
  %s8 = scalar_select 0, %s7, %s5
  $region1: #{tpu_custom_call.1} parent=0
    #allocation3 [shape = 'u8[8192]{0}', space=vmem, size = 0x2000, scoped, tag = 'input window, operand 0, single buffered']
    #allocation4 [shape = 's32[1]{0}', space=sflag, size = 0x4, scoped, tag = 'scoped memory for tpu_custom_call.1']
    #allocation5 [shape = 's32[1]{0}', space=sflag, size = 0x4, scoped, tag = 'scoped memory for tpu_custom_call.1']
    #allocation6 [shape = 'u8[8192]{0}', space=vmem, size = 0x2000, scoped, tag = 'input window, operand 1, single buffered']
    #allocation7 [shape = 's32[1]{0}', space=sflag, size = 0x4, scoped, tag = 'scoped memory for tpu_custom_call.1']
    #allocation8 [shape = 'u8[512]{0}', space=vmem, size = 0x400, scoped, tag = 'output window, operand 0, single buffered']
    %9 = vsyncpa [#allocation4], 0
    %10 = vsyncpa [#allocation7], 0
    %11 = vsyncpa [#allocation5], 0
    // Predicated region
    $region2: #{tpu_custom_call.1} parent=1 // pred_check
      _
    $region3: #{tpu_custom_call.1} parent=1 // pred_check_branch
      %13 = sbr.rel (0) target = $region5
    $region4: #{tpu_custom_call.1} parent=1 // pred_region
      %s15 = ssub.s32 256, 256
      %16 = vsyncadd [#allocation4], %s15
      %s17 = sshll.u32 [#allocation3], 4
      %s18 = int_to_ptr.vmem [resolvable:$true] %s17
      %23 = dma.hbm_to_vmem [thread:$0]  %s0, 256, %s18, [#allocation4], 128, 128, 8
    $region5: #{tpu_custom_call.1} parent=1 // pred_fallthru
      _
    // Predicated region
    $region6: #{tpu_custom_call.1} parent=1 // pred_check
      _
    $region7: #{tpu_custom_call.1} parent=1 // pred_check_branch
      %25 = sbr.rel (0) target = $region9
    $region8: #{tpu_custom_call.1} parent=1 // pred_region
      %s27 = ssub.s32 256, 256
      %28 = vsyncadd [#allocation7], %s27
      %s29 = sshll.u32 [#allocation6], 4
      %s30 = int_to_ptr.vmem [resolvable:$true] %s29
      %35 = dma.hbm_to_vmem [thread:$0]  %s1, 256, %s30, [#allocation7], 128, 128, 8
    $region9: #{tpu_custom_call.1} parent=1 // pred_fallthru
      _
    // Predicated region
    $region10: #{tpu_custom_call.1} parent=1 // pred_check
      _
    $region11: #{tpu_custom_call.1} parent=1 // pred_check_branch
      %37 = sbr.rel (0) target = $region13
    $region12: #{tpu_custom_call.1} parent=1 // pred_region
      _
    $region13: #{tpu_custom_call.1} parent=1 // pred_fallthru
      _
    // Predicated region
    $region14: #{tpu_custom_call.1} parent=1 // pred_check
      _
    $region15: #{tpu_custom_call.1} parent=1 // pred_check_branch
      %39 = sbr.rel (0) target = $region17
    $region16: #{tpu_custom_call.1} parent=1 // pred_region
      _
    $region17: #{tpu_custom_call.1} parent=1 // pred_fallthru
      _
    // Predicated region
    $region18: #{tpu_custom_call.1} parent=1 // pred_check
      _
    $region19: #{tpu_custom_call.1} parent=1 // pred_check_branch
      %41 = sbr.rel (0) target = $region21
    $region20: #{tpu_custom_call.1} parent=1 // pred_region
      %42 = dma.done [#allocation4], 256
    $region21: #{tpu_custom_call.1} parent=1 // pred_fallthru
      _
    // Predicated region
    $region22: #{tpu_custom_call.1} parent=1 // pred_check
      _
    $region23: #{tpu_custom_call.1} parent=1 // pred_check_branch
      %44 = sbr.rel (0) target = $region25
    $region24: #{tpu_custom_call.1} parent=1 // pred_region
      %45 = dma.done [#allocation7], 256
    $region25: #{tpu_custom_call.1} parent=1 // pred_fallthru
      _
    %p46 = scmp.eq.s32.totalorder 0, 0
    // Predicated region
    $region26: #{tpu_custom_call.1} parent=1 // pred_check
      %p47 = pneg %p46
    $region27: #{tpu_custom_call.1} parent=1 // pred_check_branch
      %49 = sbr.rel (%p47) target = $region29
    $region28: #{tpu_custom_call.1} parent=1 // pred_region
      %vm50 = vcmask 122880
      %51 = vst.msk [vmem:[#allocation2] sm:$0x1] %vm50, 0.0
    $region29: #{tpu_custom_call.1} parent=1 // pred_fallthru
      _
    %v52 = vld [vmem:[#allocation3] sm:$0xff]
    %v53 = vld [vmem:[#allocation3 + $0x8] sm:$0xff]
    %v54 = vld [vmem:[#allocation6] sm:$0xff]
    %v55 = vld [vmem:[#allocation6 + $0x8] sm:$0xff]
    %vm56 = vcmask 261120
    %v58 = vsel %vm56, %v52, 0
    %v61 = vsel %vm56, %v53, 0
    %v64 = vsel %vm56, %v54, 0
    %v67 = vsel %vm56, %v55, 0
    %69 = vmatprep.subr.mxu0 0.0
    %70 = vmatpush1.xpose.msra.mxu0 0.0
    %71 = vmatprep.subr.mxu0 0.0
    %72 = vmatpush1.xpose.msra.mxu0 0.0
    %73 = vmatprep.subr.mxu0 0.0
    %74 = vmatpush1.xpose.msra.mxu0 0.0
    %75 = vmatprep.subr.mxu0 0.0
    %76 = vmatpush1.xpose.msra.mxu0 0.0
    %77 = vmatprep.subr.mxu0 0.0
    %78 = vmatpush1.xpose.msra.mxu0 0.0
    %79 = vmatprep.subr.mxu0 0.0
    %80 = vmatpush1.xpose.msra.mxu0 0.0
    %81 = vmatprep.subr.mxu0 0.0
    %82 = vmatpush1.xpose.msra.mxu0 0.0
    %83 = vmatprep.subr.mxu0 0.0
    %84 = vmatpush1.xpose.msra.mxu0 0.0
    %85 = vmatprep.subr.mxu0 0.0
    %86 = vmatpush1.xpose.msra.mxu0 0.0
    %87 = vmatprep.subr.mxu0 0.0
    %88 = vmatpush1.xpose.msra.mxu0 0.0
    %89 = vmatprep.subr.mxu0 0.0
    %90 = vmatpush1.xpose.msra.mxu0 0.0
    %91 = vmatprep.subr.mxu0 0.0
    %92 = vmatpush1.xpose.msra.mxu0 0.0
    %93 = vmatprep.subr.mxu0 0.0
    %94 = vmatpush1.xpose.msra.mxu0 0.0
    %95 = vmatprep.subr.mxu0 0.0
    %96 = vmatpush1.xpose.msra.mxu0 0.0
    %97 = vmatprep.subr.mxu0 0.0
    %98 = vmatpush1.xpose.msra.mxu0 %v67
    %99 = vmatprep.subr.mxu0 0.0
    %100 = vmatpush1.xpose.msra.mxu0 %v64
    %101 = vmatprep.subr.mxu0 0.0
    %102 = vmatpush2.xpose.msra.mxu0 0.0
    %103 = vmatprep.subr.mxu0 0.0
    %104 = vmatpush2.xpose.msra.mxu0 0.0
    %105 = vmatprep.subr.mxu0 0.0
    %106 = vmatpush2.xpose.msra.mxu0 0.0
    %107 = vmatprep.subr.mxu0 0.0
    %108 = vmatpush2.xpose.msra.mxu0 0.0
    %109 = vmatprep.subr.mxu0 0.0
    %110 = vmatpush2.xpose.msra.mxu0 0.0
    %111 = vmatprep.subr.mxu0 0.0
    %112 = vmatpush2.xpose.msra.mxu0 0.0
    %113 = vmatprep.subr.mxu0 0.0
    %114 = vmatpush2.xpose.msra.mxu0 0.0
    %115 = vmatprep.subr.mxu0 0.0
    %116 = vmatpush2.xpose.msra.mxu0 0.0
    %117 = vmatprep.subr.mxu0 0.0
    %118 = vmatpush2.xpose.msra.mxu0 0.0
    %119 = vmatprep.subr.mxu0 0.0
    %120 = vmatpush2.xpose.msra.mxu0 0.0
    %121 = vmatprep.subr.mxu0 0.0
    %122 = vmatpush2.xpose.msra.mxu0 0.0
    %123 = vmatprep.subr.mxu0 0.0
    %124 = vmatpush2.xpose.msra.mxu0 0.0
    %125 = vmatprep.subr.mxu0 0.0
    %126 = vmatpush2.xpose.msra.mxu0 0.0
    %127 = vmatprep.subr.mxu0 0.0
    %128 = vmatpush2.xpose.msra.mxu0 0.0
    %129 = vmatprep.subr.mxu0 0.0
    %130 = vmatpush2.xpose.msra.mxu0 0.0
    %131 = vmatprep.subr.mxu0 0.0
    %132 = vmatpush2.xpose.msra.mxu0 0.0
    %133 = vmatprep.mubr.f32.mxu0 0.0
    %134 = vmatmul.mubr.f32.gmra.mxu0 %v58
    %v135 = vpop.f32.mrf.mxu0
    %v136 = vadd.f32 0.0, %v135
    %v137 = vpop.f32.mrf.mxu0
    %138 = vmatprep.mubr.f32.mxu0 0.0
    %139 = vmatmul.mubr.f32.gmra.mxu0 %v61
    %v140 = vpop.f32.mrf.mxu0
    %v141 = vadd.f32 0.0, %v140
    %v142 = vpop.f32.mrf.mxu0
    %143 = vdwg.mxu0
    %v144 = vld [vmem:[%s2] sm:$0x1]
    %v145 = vand.u32 2147483647, %v144
    %v146 = vadd.f32 %v145, 1e-06
    %v147 = vld [vmem:[#allocation2] sm:$0x1]
    %v148 = vand.u32 2147483647, %v136
    %v149 = vand.u32 2147483647, %v141
    %vm150 = vcmask 130048
    %v152 = vsel %vm150, %v146, 0
    %154 = vmatprep.subr.mxu0 0.0
    %155 = vmatpush1.msra.mxu0 0.0
    %156 = vmatprep.subr.mxu0 0.0
    %157 = vmatpush1.msra.mxu0 0.0
    %158 = vmatprep.subr.mxu0 0.0
    %159 = vmatpush1.msra.mxu0 0.0
    %160 = vmatprep.subr.mxu0 0.0
    %161 = vmatpush1.msra.mxu0 0.0
    %162 = vmatprep.subr.mxu0 0.0
    %163 = vmatpush1.msra.mxu0 0.0
    %164 = vmatprep.subr.mxu0 0.0
    %165 = vmatpush1.msra.mxu0 0.0
    %166 = vmatprep.subr.mxu0 0.0
    %167 = vmatpush1.msra.mxu0 0.0
    %168 = vmatprep.subr.mxu0 0.0
    %169 = vmatpush1.msra.mxu0 0.0
    %170 = vmatprep.subr.mxu0 0.0
    %171 = vmatpush1.msra.mxu0 0.0
    %172 = vmatprep.subr.mxu0 0.0
    %173 = vmatpush1.msra.mxu0 0.0
    %174 = vmatprep.subr.mxu0 0.0
    %175 = vmatpush1.msra.mxu0 0.0
    %176 = vmatprep.subr.mxu0 0.0
    %177 = vmatpush1.msra.mxu0 0.0
    %178 = vmatprep.subr.mxu0 0.0
    %179 = vmatpush1.msra.mxu0 0.0
    %180 = vmatprep.subr.mxu0 0.0
    %181 = vmatpush1.msra.mxu0 0.0
    %182 = vmatprep.subr.mxu0 0.0
    %183 = vmatpush1.msra.mxu0 %v149
    %184 = vmatprep.subr.mxu0 0.0
    %185 = vmatpush1.msra.mxu0 %v148
    %186 = vmatprep.subr.mxu0 0.0
    %187 = vmatpush2.msra.mxu0 0.0
    %188 = vmatprep.subr.mxu0 0.0
    %189 = vmatpush2.msra.mxu0 0.0
    %190 = vmatprep.subr.mxu0 0.0
    %191 = vmatpush2.msra.mxu0 0.0
    %192 = vmatprep.subr.mxu0 0.0
    %193 = vmatpush2.msra.mxu0 0.0
    %194 = vmatprep.subr.mxu0 0.0
    %195 = vmatpush2.msra.mxu0 0.0
    %196 = vmatprep.subr.mxu0 0.0
    %197 = vmatpush2.msra.mxu0 0.0
    %198 = vmatprep.subr.mxu0 0.0
    %199 = vmatpush2.msra.mxu0 0.0
    %200 = vmatprep.subr.mxu0 0.0
    %201 = vmatpush2.msra.mxu0 0.0
    %202 = vmatprep.subr.mxu0 0.0
    %203 = vmatpush2.msra.mxu0 0.0
    %204 = vmatprep.subr.mxu0 0.0
    %205 = vmatpush2.msra.mxu0 0.0
    %206 = vmatprep.subr.mxu0 0.0
    %207 = vmatpush2.msra.mxu0 0.0
    %208 = vmatprep.subr.mxu0 0.0
    %209 = vmatpush2.msra.mxu0 0.0
    %210 = vmatprep.subr.mxu0 0.0
    %211 = vmatpush2.msra.mxu0 0.0
    %212 = vmatprep.subr.mxu0 0.0
    %213 = vmatpush2.msra.mxu0 0.0
    %214 = vmatprep.subr.mxu0 0.0
    %215 = vmatpush2.msra.mxu0 0.0
    %216 = vmatprep.subr.mxu0 0.0
    %217 = vmatpush2.msra.mxu0 0.0
    %218 = vmatprep.mubr.f32.mxu0 0.0
    %219 = vmatmul.mubr.f32.gmra.mxu0 %v152
    %v220 = vpop.f32.mrf.mxu0
    %v221 = vadd.f32 0.0, %v220
    %v222 = vpop.f32.mrf.mxu0
    %223 = vdwg.mxu0
    %v224 = vadd.f32 %v147, %v221
    %vm225 = vcmask 122880
    %226 = vst.msk [vmem:[#allocation2] sm:$0x1] %vm225, %v224
    // Predicated region
    $region30: #{tpu_custom_call.1} parent=1 // pred_check
      %p227 = pneg %p46
    $region31: #{tpu_custom_call.1} parent=1 // pred_check_branch
      %229 = sbr.rel (%p227) target = $region33
    $region32: #{tpu_custom_call.1} parent=1 // pred_region
      %v230 = vld [vmem:[%s3] sm:$0x1]
      %v231 = vand.u32 2147483647, %v230
      %v232 = vadd.f32 %v231, 1e-06
      %v233 = vmul.f32 %v232, 2.0
      %v234 = vld [vmem:[#allocation2] sm:$0x1]
      %v235 = vrcp.pop %v234
      %v236 = vmul.f32 %v233, %v235
      %237 = vst.msk [vmem:[#allocation8] sm:$0x1] %vm225, %v236
    $region33: #{tpu_custom_call.1} parent=1 // pred_fallthru
      _
    // Predicated region
    $region34: #{tpu_custom_call.1} parent=1 // pred_check
      _
    $region35: #{tpu_custom_call.1} parent=1 // pred_check_branch
      %239 = sbr.rel (0) target = $region37
    $region36: #{tpu_custom_call.1} parent=1 // pred_region
      %s241 = ssub.s32 16, 16
      %242 = vsyncadd [#allocation5], %s241
      %s244 = sshll.u32 [#allocation8], 4
      %s245 = int_to_ptr.vmem [resolvable:$true] %s244
      %247 = dma.vmem_to_hbm [thread:$0]  %s245, 16, %s4, [#allocation5]
    $region37: #{tpu_custom_call.1} parent=1 // pred_fallthru
      _
    // Predicated region
    $region38: #{tpu_custom_call.1} parent=1 // pred_check
      _
    $region39: #{tpu_custom_call.1} parent=1 // pred_check_branch
      %249 = sbr.rel (0) target = $region41
    $region40: #{tpu_custom_call.1} parent=1 // pred_region
      %250 = dma.done [#allocation5], 16
    $region41: #{tpu_custom_call.1} parent=1 // pred_fallthru
      _
    %251 = vsyncpa [#allocation4], 1
    %252 = vsyncpa [#allocation7], 1
    %253 = vsyncpa [#allocation5], 1

</llo_original>
